<compile_context>
chip_gen: v5e
topology: v5e:2x2
jax: 0.10.0
libtpu: 0.0.40
codegen_flags: <defaults>
</compile_context>

<pallas_src>
import functools

import jax
import jax.numpy as jnp
from jax.experimental import pallas as pl
from jax.experimental.pallas import tpu as pltpu


# ------------------------------ fused kernel ------------------------------- #
def _bilstm_kernel(x_ref, wih_ref, whh_ref, b_ref, fcw_ref, fcb_ref,
                   out_ref, fc_ref, *, T, B, H):
    G = 8 * H          # fused gate width (both directions)
    TWO_H = 2 * H

    # Hoisted input projection: all T timesteps, both directions, ONE matmul.
    # x_ref: (T*B, D) time-major; wih_ref: (D, 8H) -> gates_x: (T*B, 8H).
    gates_x = jnp.dot(x_ref[...], wih_ref[...],
                      preferred_element_type=jnp.float32)

    whh = whh_ref[...]          # (2H, 8H) block-diagonal (fwd rows -> fwd cols)
    bias = b_ref[...]           # (1, 8H)  combined b_ih + b_hh, both directions

    # Lane mask: within each 2H gate block, first H lanes belong to the
    # forward direction, last H to the backward direction.
    lane = jax.lax.broadcasted_iota(jnp.int32, (B, G), 1)
    is_fwd = (lane % TWO_H) < H

    h = jnp.zeros((B, TWO_H), jnp.float32)   # [h_f | h_b]
    c = jnp.zeros((B, TWO_H), jnp.float32)   # [c_f | c_b]
    hb_at_last_t = None

    # T=8: fully unrolled, every index below is a Python int (static slices,
    # static stores).  For large T switch to lax.fori_loop(unroll=True).
    for s in range(T):
        t_f = s              # forward-direction time index
        t_b = T - 1 - s      # backward-direction time index

        # Merge the hoisted input gates of both directions (different time
        # rows) into one (B, 8H) tile with a lane select — no lane shuffles.
        gx = jnp.where(is_fwd,
                       gates_x[t_f * B:(t_f + 1) * B, :],
                       gates_x[t_b * B:(t_b + 1) * B, :])

        # Single fused recurrent matmul for both directions (K=2H, N=8H=128).
        gates = gx + jnp.dot(h, whh, preferred_element_type=jnp.float32) + bias

        i = jax.nn.sigmoid(gates[:, 0 * TWO_H:1 * TWO_H])
        f = jax.nn.sigmoid(gates[:, 1 * TWO_H:2 * TWO_H])
        g = jnp.tanh(gates[:, 2 * TWO_H:3 * TWO_H])
        o = jax.nn.sigmoid(gates[:, 3 * TWO_H:4 * TWO_H])
        c = f * c + i * g
        h = o * jnp.tanh(c)

        # Scatter into the time-major output: fwd h at time t_f, bwd h at t_b.
        out_ref[t_f, :, 0:H] = h[:, 0:H]
        out_ref[t_b, :, H:TWO_H] = h[:, H:TWO_H]

        if s == 0:
            hb_at_last_t = h[:, H:TWO_H]   # backward output at time T-1

    # Dead FC head: fc(bilstm_out[:, -1, :]).  Computed for parity with the
    # PyTorch forward (which computes `out` and then returns bilstm_out);
    # the wrapper discards it.
    last_step = jnp.concatenate([h[:, 0:H], hb_at_last_t], axis=1)   # (B, 2H)
    fc_ref[...] = (jnp.dot(last_step, fcw_ref[...],
                           preferred_element_type=jnp.float32)
                   + fcb_ref[...])


# --------------------------- weight preprocessing --------------------------- #
def _build_fused_weights(params):
    """Build interleaved-gate fused weights for the kernel."""
    H = params["whh_f"].shape[1]

    def combine_cols(wf_t, wb_t):
        # wf_t/wb_t: (R, 4H) with PyTorch gate column order [i f g o].
        # -> (R, 8H) with layout [i_f i_b f_f f_b g_f g_b o_f o_b].
        R = wf_t.shape[0]
        return jnp.stack(
            [wf_t.reshape(R, 4, H), wb_t.reshape(R, 4, H)], axis=2
        ).reshape(R, 8 * H)

    wih_c = combine_cols(params["wih_f"].T, params["wih_b"].T)        # (D, 8H)

    zeros_h = jnp.zeros((H, 4 * H), jnp.float32)
    whh_c = jnp.concatenate(
        [combine_cols(params["whh_f"].T, zeros_h),     # h_f rows -> fwd cols
         combine_cols(zeros_h, params["whh_b"].T)],    # h_b rows -> bwd cols
        axis=0)                                                       # (2H, 8H)

    bias_c = combine_cols(
        (params["bih_f"] + params["bhh_f"]).reshape(1, 4 * H),
        (params["bih_b"] + params["bhh_b"]).reshape(1, 4 * H))        # (1, 8H)
    return wih_c, whh_c, bias_c


# ----------------------------- model forward ------------------------------- #
@jax.jit
def lstm_model_forward(x, params):
    """x: (B, T, D) float32 -> bilstm_out: (B, T, 2H) float32."""
    B, T, D = x.shape
    H = params["whh_f"].shape[1]
    O = params["fc_w"].shape[0]

    wih_c, whh_c, bias_c = _build_fused_weights(params)
    fcw = params["fc_w"].T                       # (2H, O)
    fcb = params["fc_b"].reshape(1, O)

    # Time-major flatten of the input (one tiny fused transpose under jit).
    x_flat = jnp.transpose(x, (1, 0, 2)).reshape(T * B, D)

    vmem = pl.BlockSpec(memory_space=pltpu.MemorySpace.VMEM)
    out_tm, fc_out = pl.pallas_call(
        functools.partial(_bilstm_kernel, T=T, B=B, H=H),
        out_shape=(jax.ShapeDtypeStruct((T, B, 2 * H), jnp.float32),
                   jax.ShapeDtypeStruct((B, O), jnp.float32)),
        in_specs=[vmem] * 6,
        out_specs=(vmem, vmem),
    )(x_flat, wih_c, whh_c, bias_c, fcw, fcb)

    del fc_out  # dead, exactly like the PyTorch forward (returns bilstm_out)
    return jnp.transpose(out_tm, (1, 0, 2))      # (B, T, 2H)


# ----------------------- pure-JAX reference (check) ------------------------ #
def _lstm_dir_ref(x, wih, whh, bih, bhh, reverse):
    B, T, D = x.shape
    H = whh.shape[1]

    def cell(carry, xt):
        h, c = carry
        gates = xt @ wih.T + h @ whh.T + bih + bhh
        i, f, g, o = jnp.split(gates, 4, axis=-1)
        c = jax.nn.sigmoid(f) * c + jax.nn.sigmoid(i) * jnp.tanh(g)
        h = jax.nn.sigmoid(o) * jnp.tanh(c)
        return (h, c), h

    xs = jnp.transpose(x, (1, 0, 2))
    if reverse:
        xs = xs[::-1]
    init = (jnp.zeros((B, H), jnp.float32), jnp.zeros((B, H), jnp.float32))
    _, hs = jax.lax.scan(cell, init, xs)
    if reverse:
        hs = hs[::-1]
    return jnp.transpose(hs, (1, 0, 2))


def bilstm_reference(x, p):
    f = _lstm_dir_ref(x, p["wih_f"], p["whh_f"], p["bih_f"], p["bhh_f"], False)
    b = _lstm_dir_ref(x, p["wih_b"], p["whh_b"], p["bih_b"], p["bhh_b"], True)
    return jnp.concatenate([f, b], axis=-1)


# --------------------------------- main ------------------------------------ #
def init_params(key, input_dim, hidden_dim, output_dim):
    """Deterministic init mirroring PyTorch's U(-1/sqrt(H), 1/sqrt(H))."""
    k = 1.0 / jnp.sqrt(hidden_dim)
    keys = jax.random.split(key, 11)
    u = lambda kk, shape, bound: jax.random.uniform(
        kk, shape, jnp.float32, -bound, bound)
    H, D, O = hidden_dim, input_dim, output_dim
    params = {
        "wih_f": u(keys[0], (4 * H, D), k),
        "whh_f": u(keys[1], (4 * H, H), k),
        "bih_f": u(keys[2], (4 * H,), k),
        "bhh_f": u(keys[3], (4 * H,), k),
        "wih_b": u(keys[4], (4 * H, D), k),
        "whh_b": u(keys[5], (4 * H, H), k),
        "bih_b": u(keys[6], (4 * H,), k),
        "bhh_b": u(keys[7], (4 * H,), k),
        "fc_w": u(keys[8], (O, 2 * H), 1.0 / jnp.sqrt(2 * H)),
        "fc_b": u(keys[9], (O,), 1.0 / jnp.sqrt(2 * H)),
    }
    return params


if __name__ == "__main__":
    B, T, D = 2, 8, 4                  # batch, seq len, one-hot input dim
    hidden_dim = 16                    # matches module global
    output_dim = 32                    # matches module global (max_sequence_length)

    key = jax.random.PRNGKey(0)
    kx, kp = jax.random.split(key)
    x = jax.random.uniform(kx, (B, T, D), jnp.float32)
    params = init_params(kp, D, hidden_dim, output_dim)

    out = jax.block_until_ready(lstm_model_forward(x, params))
    assert out.shape == (B, T, 2 * hidden_dim), out.shape

    ref = jax.block_until_ready(bilstm_reference(x, params))
    assert jnp.allclose(out, ref, atol=2e-2, rtol=2e-2), \
        float(jnp.max(jnp.abs(out - ref)))

    print("KERNEL_OK")
</pallas_src>

<mosaic_0001>
module attributes {stable_mosaic.version = 11 : i64} {
  func.func @_bilstm_kernel(%arg0: memref<16x4xf32, #tpu.memory_space<vmem>>, %arg1: memref<4x128xf32, #tpu.memory_space<vmem>>, %arg2: memref<32x128xf32, #tpu.memory_space<vmem>>, %arg3: memref<1x128xf32, #tpu.memory_space<vmem>>, %arg4: memref<32x32xf32, #tpu.memory_space<vmem>>, %arg5: memref<1x32xf32, #tpu.memory_space<vmem>>, %arg6: memref<8x2x32xf32, #tpu.memory_space<vmem>>, %arg7: memref<2x32xf32, #tpu.memory_space<vmem>>) attributes {dimension_semantics = [], scalar_prefetch = 0 : i64, scratch_operands = 0 : i64, tpu.core_type = #tpu.core_type<tc>} {
    %c0 = arith.constant 0 : index
    %c0_0 = arith.constant 0 : index
    %0 = vector.load %arg0[%c0, %c0_0] : memref<16x4xf32, #tpu.memory_space<vmem>>, vector<16x4xf32>
    %c0_1 = arith.constant 0 : index
    %c0_2 = arith.constant 0 : index
    %1 = vector.load %arg1[%c0_1, %c0_2] : memref<4x128xf32, #tpu.memory_space<vmem>>, vector<4x128xf32>
    %cst = arith.constant dense<0.000000e+00> : vector<16x128xf32>
    %2 = tpu.matmul %0, %1, %cst {dimension_numbers = #tpu.dot_dimension_numbers<[1], [0], [0], [1], [0, 0, 1, 1], [], []>} : vector<16x4xf32>, vector<4x128xf32>, vector<16x128xf32> -> vector<16x128xf32>
    %c0_3 = arith.constant 0 : index
    %c0_4 = arith.constant 0 : index
    %3 = vector.load %arg2[%c0_3, %c0_4] : memref<32x128xf32, #tpu.memory_space<vmem>>, vector<32x128xf32>
    %c0_5 = arith.constant 0 : index
    %c0_6 = arith.constant 0 : index
    %4 = vector.load %arg3[%c0_5, %c0_6] : memref<1x128xf32, #tpu.memory_space<vmem>>, vector<1x128xf32>
    %5 = tpu.iota {dimensions = array<i32: 1>} : vector<2x128xi32>
    %c32_i32 = arith.constant 32 : i32
    %c0_i32 = arith.constant 0 : i32
    %6 = arith.cmpi eq, %c32_i32, %c0_i32 : i32
    %c1_i32 = arith.constant 1 : i32
    %7 = arith.select %6, %c1_i32, %c32_i32 : i32
    %8 = vector.broadcast %7 : i32 to vector<2x128xi32>
    %9 = arith.remsi %5, %8 : vector<2x128xi32>
    %c0_i32_7 = arith.constant 0 : i32
    %10 = vector.broadcast %c0_i32_7 : i32 to vector<2x128xi32>
    %11 = arith.cmpi ne, %9, %10 : vector<2x128xi32>
    %c0_i32_8 = arith.constant 0 : i32
    %12 = vector.broadcast %c0_i32_8 : i32 to vector<2x128xi32>
    %13 = arith.cmpi slt, %9, %12 : vector<2x128xi32>
    %c0_i32_9 = arith.constant 0 : i32
    %14 = arith.cmpi slt, %7, %c0_i32_9 : i32
    %15 = vector.broadcast %14 : i1 to vector<2x128xi1>
    %16 = vector.broadcast %15 : vector<2x128xi1> to vector<2x128xi1>
    %17 = arith.xori %13, %16 : vector<2x128xi1>
    %18 = arith.andi %17, %11 : vector<2x128xi1>
    %19 = vector.broadcast %7 : i32 to vector<2x128xi32>
    %20 = arith.addi %9, %19 : vector<2x128xi32>
    %21 = arith.select %18, %20, %9 : vector<2x128xi1>, vector<2x128xi32>
    %c16_i32 = arith.constant 16 : i32
    %22 = vector.broadcast %c16_i32 : i32 to vector<2x128xi32>
    %23 = arith.cmpi slt, %21, %22 : vector<2x128xi32>
    %cst_10 = arith.constant 0.000000e+00 : f32
    %24 = vector.broadcast %cst_10 : f32 to vector<2x32xf32>
    %cst_11 = arith.constant 0.000000e+00 : f32
    %25 = vector.broadcast %cst_11 : f32 to vector<2x32xf32>
    %26 = vector.extract_strided_slice %2 {offsets = [0, 0], sizes = [2, 128], strides = [1, 1]} : vector<16x128xf32> to vector<2x128xf32>
    %27 = vector.extract_strided_slice %2 {offsets = [14, 0], sizes = [2, 128], strides = [1, 1]} : vector<16x128xf32> to vector<2x128xf32>
    %28 = arith.select %23, %26, %27 : vector<2x128xi1>, vector<2x128xf32>
    %cst_12 = arith.constant dense<0.000000e+00> : vector<2x128xf32>
    %29 = tpu.matmul %24, %3, %cst_12 {dimension_numbers = #tpu.dot_dimension_numbers<[1], [0], [0], [1], [0, 0, 1, 1], [], []>} : vector<2x32xf32>, vector<32x128xf32>, vector<2x128xf32> -> vector<2x128xf32>
    %30 = arith.addf %28, %29 : vector<2x128xf32>
    %31 = vector.broadcast %4 : vector<1x128xf32> to vector<2x128xf32>
    %32 = arith.addf %30, %31 : vector<2x128xf32>
    %33 = vector.extract_strided_slice %32 {offsets = [0, 0], sizes = [2, 32], strides = [1, 1]} : vector<2x128xf32> to vector<2x32xf32>
    %34 = arith.negf %33 : vector<2x32xf32>
    %35 = math.exp %34 : vector<2x32xf32>
    %cst_13 = arith.constant 1.000000e+00 : f32
    %36 = vector.broadcast %cst_13 : f32 to vector<2x32xf32>
    %37 = arith.addf %36, %35 : vector<2x32xf32>
    %38 = arith.divf %36, %37 : vector<2x32xf32>
    %39 = vector.extract_strided_slice %32 {offsets = [0, 32], sizes = [2, 32], strides = [1, 1]} : vector<2x128xf32> to vector<2x32xf32>
    %40 = arith.negf %39 : vector<2x32xf32>
    %41 = math.exp %40 : vector<2x32xf32>
    %cst_14 = arith.constant 1.000000e+00 : f32
    %42 = vector.broadcast %cst_14 : f32 to vector<2x32xf32>
    %43 = arith.addf %42, %41 : vector<2x32xf32>
    %44 = arith.divf %42, %43 : vector<2x32xf32>
    %45 = vector.extract_strided_slice %32 {offsets = [0, 64], sizes = [2, 32], strides = [1, 1]} : vector<2x128xf32> to vector<2x32xf32>
    %46 = math.tanh %45 : vector<2x32xf32>
    %47 = vector.extract_strided_slice %32 {offsets = [0, 96], sizes = [2, 32], strides = [1, 1]} : vector<2x128xf32> to vector<2x32xf32>
    %48 = arith.negf %47 : vector<2x32xf32>
    %49 = math.exp %48 : vector<2x32xf32>
    %cst_15 = arith.constant 1.000000e+00 : f32
    %50 = vector.broadcast %cst_15 : f32 to vector<2x32xf32>
    %51 = arith.addf %50, %49 : vector<2x32xf32>
    %52 = arith.divf %50, %51 : vector<2x32xf32>
    %53 = arith.mulf %44, %25 : vector<2x32xf32>
    %54 = arith.mulf %38, %46 : vector<2x32xf32>
    %55 = arith.addf %53, %54 : vector<2x32xf32>
    %56 = math.tanh %55 : vector<2x32xf32>
    %57 = arith.mulf %52, %56 : vector<2x32xf32>
    %58 = vector.extract_strided_slice %57 {offsets = [0, 0], sizes = [2, 16], strides = [1, 1]} : vector<2x32xf32> to vector<2x16xf32>
    %c0_16 = arith.constant 0 : index
    %c0_17 = arith.constant 0 : index
    %c0_18 = arith.constant 0 : index
    %59 = vector.load %arg6[%c0_16, %c0_17, %c0_18] : memref<8x2x32xf32, #tpu.memory_space<vmem>>, vector<1x2x16xf32>
    %60 = vector.shape_cast %59 : vector<1x2x16xf32> to vector<2x16xf32>
    %61 = vector.shape_cast %58 : vector<2x16xf32> to vector<1x2x16xf32>
    tpu.vector_store %arg6[%c0_16, %c0_17, %c0_18], %61 {strides = array<i32>} : memref<8x2x32xf32, #tpu.memory_space<vmem>>, vector<1x2x16xf32>,
    %62 = vector.extract_strided_slice %57 {offsets = [0, 16], sizes = [2, 16], strides = [1, 1]} : vector<2x32xf32> to vector<2x16xf32>
    %c7 = arith.constant 7 : index
    %c0_19 = arith.constant 0 : index
    %c16 = arith.constant 16 : index
    %63 = vector.load %arg6[%c7, %c0_19, %c16] : memref<8x2x32xf32, #tpu.memory_space<vmem>>, vector<1x2x16xf32>
    %64 = vector.shape_cast %63 : vector<1x2x16xf32> to vector<2x16xf32>
    %65 = vector.shape_cast %62 : vector<2x16xf32> to vector<1x2x16xf32>
    tpu.vector_store %arg6[%c7, %c0_19, %c16], %65 {strides = array<i32>} : memref<8x2x32xf32, #tpu.memory_space<vmem>>, vector<1x2x16xf32>,
    %66 = vector.extract_strided_slice %57 {offsets = [0, 16], sizes = [2, 16], strides = [1, 1]} : vector<2x32xf32> to vector<2x16xf32>
    %67 = vector.extract_strided_slice %2 {offsets = [2, 0], sizes = [2, 128], strides = [1, 1]} : vector<16x128xf32> to vector<2x128xf32>
    %68 = vector.extract_strided_slice %2 {offsets = [12, 0], sizes = [2, 128], strides = [1, 1]} : vector<16x128xf32> to vector<2x128xf32>
    %69 = arith.select %23, %67, %68 : vector<2x128xi1>, vector<2x128xf32>
    %cst_20 = arith.constant dense<0.000000e+00> : vector<2x128xf32>
    %70 = tpu.matmul %57, %3, %cst_20 {dimension_numbers = #tpu.dot_dimension_numbers<[1], [0], [0], [1], [0, 0, 1, 1], [], []>} : vector<2x32xf32>, vector<32x128xf32>, vector<2x128xf32> -> vector<2x128xf32>
    %71 = arith.addf %69, %70 : vector<2x128xf32>
    %72 = vector.broadcast %4 : vector<1x128xf32> to vector<2x128xf32>
    %73 = arith.addf %71, %72 : vector<2x128xf32>
    %74 = vector.extract_strided_slice %73 {offsets = [0, 0], sizes = [2, 32], strides = [1, 1]} : vector<2x128xf32> to vector<2x32xf32>
    %75 = arith.negf %74 : vector<2x32xf32>
    %76 = math.exp %75 : vector<2x32xf32>
    %cst_21 = arith.constant 1.000000e+00 : f32
    %77 = vector.broadcast %cst_21 : f32 to vector<2x32xf32>
    %78 = arith.addf %77, %76 : vector<2x32xf32>
    %79 = arith.divf %77, %78 : vector<2x32xf32>
    %80 = vector.extract_strided_slice %73 {offsets = [0, 32], sizes = [2, 32], strides = [1, 1]} : vector<2x128xf32> to vector<2x32xf32>
    %81 = arith.negf %80 : vector<2x32xf32>
    %82 = math.exp %81 : vector<2x32xf32>
    %cst_22 = arith.constant 1.000000e+00 : f32
    %83 = vector.broadcast %cst_22 : f32 to vector<2x32xf32>
    %84 = arith.addf %83, %82 : vector<2x32xf32>
    %85 = arith.divf %83, %84 : vector<2x32xf32>
    %86 = vector.extract_strided_slice %73 {offsets = [0, 64], sizes = [2, 32], strides = [1, 1]} : vector<2x128xf32> to vector<2x32xf32>
    %87 = math.tanh %86 : vector<2x32xf32>
    %88 = vector.extract_strided_slice %73 {offsets = [0, 96], sizes = [2, 32], strides = [1, 1]} : vector<2x128xf32> to vector<2x32xf32>
    %89 = arith.negf %88 : vector<2x32xf32>
    %90 = math.exp %89 : vector<2x32xf32>
    %cst_23 = arith.constant 1.000000e+00 : f32
    %91 = vector.broadcast %cst_23 : f32 to vector<2x32xf32>
    %92 = arith.addf %91, %90 : vector<2x32xf32>
    %93 = arith.divf %91, %92 : vector<2x32xf32>
    %94 = arith.mulf %85, %55 : vector<2x32xf32>
    %95 = arith.mulf %79, %87 : vector<2x32xf32>
    %96 = arith.addf %94, %95 : vector<2x32xf32>
    %97 = math.tanh %96 : vector<2x32xf32>
    %98 = arith.mulf %93, %97 : vector<2x32xf32>
    %99 = vector.extract_strided_slice %98 {offsets = [0, 0], sizes = [2, 16], strides = [1, 1]} : vector<2x32xf32> to vector<2x16xf32>
    %c1 = arith.constant 1 : index
    %c0_24 = arith.constant 0 : index
    %c0_25 = arith.constant 0 : index
    %100 = vector.load %arg6[%c1, %c0_24, %c0_25] : memref<8x2x32xf32, #tpu.memory_space<vmem>>, vector<1x2x16xf32>
    %101 = vector.shape_cast %100 : vector<1x2x16xf32> to vector<2x16xf32>
    %102 = vector.shape_cast %99 : vector<2x16xf32> to vector<1x2x16xf32>
    tpu.vector_store %arg6[%c1, %c0_24, %c0_25], %102 {strides = array<i32>} : memref<8x2x32xf32, #tpu.memory_space<vmem>>, vector<1x2x16xf32>,
    %103 = vector.extract_strided_slice %98 {offsets = [0, 16], sizes = [2, 16], strides = [1, 1]} : vector<2x32xf32> to vector<2x16xf32>
    %c6 = arith.constant 6 : index
    %c0_26 = arith.constant 0 : index
    %c16_27 = arith.constant 16 : index
    %104 = vector.load %arg6[%c6, %c0_26, %c16_27] : memref<8x2x32xf32, #tpu.memory_space<vmem>>, vector<1x2x16xf32>
    %105 = vector.shape_cast %104 : vector<1x2x16xf32> to vector<2x16xf32>
    %106 = vector.shape_cast %103 : vector<2x16xf32> to vector<1x2x16xf32>
    tpu.vector_store %arg6[%c6, %c0_26, %c16_27], %106 {strides = array<i32>} : memref<8x2x32xf32, #tpu.memory_space<vmem>>, vector<1x2x16xf32>,
    %107 = vector.extract_strided_slice %2 {offsets = [4, 0], sizes = [2, 128], strides = [1, 1]} : vector<16x128xf32> to vector<2x128xf32>
    %108 = vector.extract_strided_slice %2 {offsets = [10, 0], sizes = [2, 128], strides = [1, 1]} : vector<16x128xf32> to vector<2x128xf32>
    %109 = arith.select %23, %107, %108 : vector<2x128xi1>, vector<2x128xf32>
    %cst_28 = arith.constant dense<0.000000e+00> : vector<2x128xf32>
    %110 = tpu.matmul %98, %3, %cst_28 {dimension_numbers = #tpu.dot_dimension_numbers<[1], [0], [0], [1], [0, 0, 1, 1], [], []>} : vector<2x32xf32>, vector<32x128xf32>, vector<2x128xf32> -> vector<2x128xf32>
    %111 = arith.addf %109, %110 : vector<2x128xf32>
    %112 = vector.broadcast %4 : vector<1x128xf32> to vector<2x128xf32>
    %113 = arith.addf %111, %112 : vector<2x128xf32>
    %114 = vector.extract_strided_slice %113 {offsets = [0, 0], sizes = [2, 32], strides = [1, 1]} : vector<2x128xf32> to vector<2x32xf32>
    %115 = arith.negf %114 : vector<2x32xf32>
    %116 = math.exp %115 : vector<2x32xf32>
    %cst_29 = arith.constant 1.000000e+00 : f32
    %117 = vector.broadcast %cst_29 : f32 to vector<2x32xf32>
    %118 = arith.addf %117, %116 : vector<2x32xf32>
    %119 = arith.divf %117, %118 : vector<2x32xf32>
    %120 = vector.extract_strided_slice %113 {offsets = [0, 32], sizes = [2, 32], strides = [1, 1]} : vector<2x128xf32> to vector<2x32xf32>
    %121 = arith.negf %120 : vector<2x32xf32>
    %122 = math.exp %121 : vector<2x32xf32>
    %cst_30 = arith.constant 1.000000e+00 : f32
    %123 = vector.broadcast %cst_30 : f32 to vector<2x32xf32>
    %124 = arith.addf %123, %122 : vector<2x32xf32>
    %125 = arith.divf %123, %124 : vector<2x32xf32>
    %126 = vector.extract_strided_slice %113 {offsets = [0, 64], sizes = [2, 32], strides = [1, 1]} : vector<2x128xf32> to vector<2x32xf32>
    %127 = math.tanh %126 : vector<2x32xf32>
    %128 = vector.extract_strided_slice %113 {offsets = [0, 96], sizes = [2, 32], strides = [1, 1]} : vector<2x128xf32> to vector<2x32xf32>
    %129 = arith.negf %128 : vector<2x32xf32>
    %130 = math.exp %129 : vector<2x32xf32>
    %cst_31 = arith.constant 1.000000e+00 : f32
    %131 = vector.broadcast %cst_31 : f32 to vector<2x32xf32>
    %132 = arith.addf %131, %130 : vector<2x32xf32>
    %133 = arith.divf %131, %132 : vector<2x32xf32>
    %134 = arith.mulf %125, %96 : vector<2x32xf32>
    %135 = arith.mulf %119, %127 : vector<2x32xf32>
    %136 = arith.addf %134, %135 : vector<2x32xf32>
    %137 = math.tanh %136 : vector<2x32xf32>
    %138 = arith.mulf %133, %137 : vector<2x32xf32>
    %139 = vector.extract_strided_slice %138 {offsets = [0, 0], sizes = [2, 16], strides = [1, 1]} : vector<2x32xf32> to vector<2x16xf32>
    %c2 = arith.constant 2 : index
    %c0_32 = arith.constant 0 : index
    %c0_33 = arith.constant 0 : index
    %140 = vector.load %arg6[%c2, %c0_32, %c0_33] : memref<8x2x32xf32, #tpu.memory_space<vmem>>, vector<1x2x16xf32>
    %141 = vector.shape_cast %140 : vector<1x2x16xf32> to vector<2x16xf32>
    %142 = vector.shape_cast %139 : vector<2x16xf32> to vector<1x2x16xf32>
    tpu.vector_store %arg6[%c2, %c0_32, %c0_33], %142 {strides = array<i32>} : memref<8x2x32xf32, #tpu.memory_space<vmem>>, vector<1x2x16xf32>,
    %143 = vector.extract_strided_slice %138 {offsets = [0, 16], sizes = [2, 16], strides = [1, 1]} : vector<2x32xf32> to vector<2x16xf32>
    %c5 = arith.constant 5 : index
    %c0_34 = arith.constant 0 : index
    %c16_35 = arith.constant 16 : index
    %144 = vector.load %arg6[%c5, %c0_34, %c16_35] : memref<8x2x32xf32, #tpu.memory_space<vmem>>, vector<1x2x16xf32>
    %145 = vector.shape_cast %144 : vector<1x2x16xf32> to vector<2x16xf32>
    %146 = vector.shape_cast %143 : vector<2x16xf32> to vector<1x2x16xf32>
    tpu.vector_store %arg6[%c5, %c0_34, %c16_35], %146 {strides = array<i32>} : memref<8x2x32xf32, #tpu.memory_space<vmem>>, vector<1x2x16xf32>,
    %147 = vector.extract_strided_slice %2 {offsets = [6, 0], sizes = [2, 128], strides = [1, 1]} : vector<16x128xf32> to vector<2x128xf32>
    %148 = vector.extract_strided_slice %2 {offsets = [8, 0], sizes = [2, 128], strides = [1, 1]} : vector<16x128xf32> to vector<2x128xf32>
    %149 = arith.select %23, %147, %148 : vector<2x128xi1>, vector<2x128xf32>
    %cst_36 = arith.constant dense<0.000000e+00> : vector<2x128xf32>
    %150 = tpu.matmul %138, %3, %cst_36 {dimension_numbers = #tpu.dot_dimension_numbers<[1], [0], [0], [1], [0, 0, 1, 1], [], []>} : vector<2x32xf32>, vector<32x128xf32>, vector<2x128xf32> -> vector<2x128xf32>
    %151 = arith.addf %149, %150 : vector<2x128xf32>
    %152 = vector.broadcast %4 : vector<1x128xf32> to vector<2x128xf32>
    %153 = arith.addf %151, %152 : vector<2x128xf32>
    %154 = vector.extract_strided_slice %153 {offsets = [0, 0], sizes = [2, 32], strides = [1, 1]} : vector<2x128xf32> to vector<2x32xf32>
    %155 = arith.negf %154 : vector<2x32xf32>
    %156 = math.exp %155 : vector<2x32xf32>
    %cst_37 = arith.constant 1.000000e+00 : f32
    %157 = vector.broadcast %cst_37 : f32 to vector<2x32xf32>
    %158 = arith.addf %157, %156 : vector<2x32xf32>
    %159 = arith.divf %157, %158 : vector<2x32xf32>
    %160 = vector.extract_strided_slice %153 {offsets = [0, 32], sizes = [2, 32], strides = [1, 1]} : vector<2x128xf32> to vector<2x32xf32>
    %161 = arith.negf %160 : vector<2x32xf32>
    %162 = math.exp %161 : vector<2x32xf32>
    %cst_38 = arith.constant 1.000000e+00 : f32
    %163 = vector.broadcast %cst_38 : f32 to vector<2x32xf32>
    %164 = arith.addf %163, %162 : vector<2x32xf32>
    %165 = arith.divf %163, %164 : vector<2x32xf32>
    %166 = vector.extract_strided_slice %153 {offsets = [0, 64], sizes = [2, 32], strides = [1, 1]} : vector<2x128xf32> to vector<2x32xf32>
    %167 = math.tanh %166 : vector<2x32xf32>
    %168 = vector.extract_strided_slice %153 {offsets = [0, 96], sizes = [2, 32], strides = [1, 1]} : vector<2x128xf32> to vector<2x32xf32>
    %169 = arith.negf %168 : vector<2x32xf32>
    %170 = math.exp %169 : vector<2x32xf32>
    %cst_39 = arith.constant 1.000000e+00 : f32
    %171 = vector.broadcast %cst_39 : f32 to vector<2x32xf32>
    %172 = arith.addf %171, %170 : vector<2x32xf32>
    %173 = arith.divf %171, %172 : vector<2x32xf32>
    %174 = arith.mulf %165, %136 : vector<2x32xf32>
    %175 = arith.mulf %159, %167 : vector<2x32xf32>
    %176 = arith.addf %174, %175 : vector<2x32xf32>
    %177 = math.tanh %176 : vector<2x32xf32>
    %178 = arith.mulf %173, %177 : vector<2x32xf32>
    %179 = vector.extract_strided_slice %178 {offsets = [0, 0], sizes = [2, 16], strides = [1, 1]} : vector<2x32xf32> to vector<2x16xf32>
    %c3 = arith.constant 3 : index
    %c0_40 = arith.constant 0 : index
    %c0_41 = arith.constant 0 : index
    %180 = vector.load %arg6[%c3, %c0_40, %c0_41] : memref<8x2x32xf32, #tpu.memory_space<vmem>>, vector<1x2x16xf32>
    %181 = vector.shape_cast %180 : vector<1x2x16xf32> to vector<2x16xf32>
    %182 = vector.shape_cast %179 : vector<2x16xf32> to vector<1x2x16xf32>
    tpu.vector_store %arg6[%c3, %c0_40, %c0_41], %182 {strides = array<i32>} : memref<8x2x32xf32, #tpu.memory_space<vmem>>, vector<1x2x16xf32>,
    %183 = vector.extract_strided_slice %178 {offsets = [0, 16], sizes = [2, 16], strides = [1, 1]} : vector<2x32xf32> to vector<2x16xf32>
    %c4 = arith.constant 4 : index
    %c0_42 = arith.constant 0 : index
    %c16_43 = arith.constant 16 : index
    %184 = vector.load %arg6[%c4, %c0_42, %c16_43] : memref<8x2x32xf32, #tpu.memory_space<vmem>>, vector<1x2x16xf32>
    %185 = vector.shape_cast %184 : vector<1x2x16xf32> to vector<2x16xf32>
    %186 = vector.shape_cast %183 : vector<2x16xf32> to vector<1x2x16xf32>
    tpu.vector_store %arg6[%c4, %c0_42, %c16_43], %186 {strides = array<i32>} : memref<8x2x32xf32, #tpu.memory_space<vmem>>, vector<1x2x16xf32>,
    %187 = vector.extract_strided_slice %2 {offsets = [8, 0], sizes = [2, 128], strides = [1, 1]} : vector<16x128xf32> to vector<2x128xf32>
    %188 = vector.extract_strided_slice %2 {offsets = [6, 0], sizes = [2, 128], strides = [1, 1]} : vector<16x128xf32> to vector<2x128xf32>
    %189 = arith.select %23, %187, %188 : vector<2x128xi1>, vector<2x128xf32>
    %cst_44 = arith.constant dense<0.000000e+00> : vector<2x128xf32>
    %190 = tpu.matmul %178, %3, %cst_44 {dimension_numbers = #tpu.dot_dimension_numbers<[1], [0], [0], [1], [0, 0, 1, 1], [], []>} : vector<2x32xf32>, vector<32x128xf32>, vector<2x128xf32> -> vector<2x128xf32>
    %191 = arith.addf %189, %190 : vector<2x128xf32>
    %192 = vector.broadcast %4 : vector<1x128xf32> to vector<2x128xf32>
    %193 = arith.addf %191, %192 : vector<2x128xf32>
    %194 = vector.extract_strided_slice %193 {offsets = [0, 0], sizes = [2, 32], strides = [1, 1]} : vector<2x128xf32> to vector<2x32xf32>
    %195 = arith.negf %194 : vector<2x32xf32>
    %196 = math.exp %195 : vector<2x32xf32>
    %cst_45 = arith.constant 1.000000e+00 : f32
    %197 = vector.broadcast %cst_45 : f32 to vector<2x32xf32>
    %198 = arith.addf %197, %196 : vector<2x32xf32>
    %199 = arith.divf %197, %198 : vector<2x32xf32>
    %200 = vector.extract_strided_slice %193 {offsets = [0, 32], sizes = [2, 32], strides = [1, 1]} : vector<2x128xf32> to vector<2x32xf32>
    %201 = arith.negf %200 : vector<2x32xf32>
    %202 = math.exp %201 : vector<2x32xf32>
    %cst_46 = arith.constant 1.000000e+00 : f32
    %203 = vector.broadcast %cst_46 : f32 to vector<2x32xf32>
    %204 = arith.addf %203, %202 : vector<2x32xf32>
    %205 = arith.divf %203, %204 : vector<2x32xf32>
    %206 = vector.extract_strided_slice %193 {offsets = [0, 64], sizes = [2, 32], strides = [1, 1]} : vector<2x128xf32> to vector<2x32xf32>
    %207 = math.tanh %206 : vector<2x32xf32>
    %208 = vector.extract_strided_slice %193 {offsets = [0, 96], sizes = [2, 32], strides = [1, 1]} : vector<2x128xf32> to vector<2x32xf32>
    %209 = arith.negf %208 : vector<2x32xf32>
    %210 = math.exp %209 : vector<2x32xf32>
    %cst_47 = arith.constant 1.000000e+00 : f32
    %211 = vector.broadcast %cst_47 : f32 to vector<2x32xf32>
    %212 = arith.addf %211, %210 : vector<2x32xf32>
    %213 = arith.divf %211, %212 : vector<2x32xf32>
    %214 = arith.mulf %205, %176 : vector<2x32xf32>
    %215 = arith.mulf %199, %207 : vector<2x32xf32>
    %216 = arith.addf %214, %215 : vector<2x32xf32>
    %217 = math.tanh %216 : vector<2x32xf32>
    %218 = arith.mulf %213, %217 : vector<2x32xf32>
    %219 = vector.extract_strided_slice %218 {offsets = [0, 0], sizes = [2, 16], strides = [1, 1]} : vector<2x32xf32> to vector<2x16xf32>
    %c4_48 = arith.constant 4 : index
    %c0_49 = arith.constant 0 : index
    %c0_50 = arith.constant 0 : index
    %220 = vector.load %arg6[%c4_48, %c0_49, %c0_50] : memref<8x2x32xf32, #tpu.memory_space<vmem>>, vector<1x2x16xf32>
    %221 = vector.shape_cast %220 : vector<1x2x16xf32> to vector<2x16xf32>
    %222 = vector.shape_cast %219 : vector<2x16xf32> to vector<1x2x16xf32>
    tpu.vector_store %arg6[%c4_48, %c0_49, %c0_50], %222 {strides = array<i32>} : memref<8x2x32xf32, #tpu.memory_space<vmem>>, vector<1x2x16xf32>,
    %223 = vector.extract_strided_slice %218 {offsets = [0, 16], sizes = [2, 16], strides = [1, 1]} : vector<2x32xf32> to vector<2x16xf32>
    %c3_51 = arith.constant 3 : index
    %c0_52 = arith.constant 0 : index
    %c16_53 = arith.constant 16 : index
    %224 = vector.load %arg6[%c3_51, %c0_52, %c16_53] : memref<8x2x32xf32, #tpu.memory_space<vmem>>, vector<1x2x16xf32>
    %225 = vector.shape_cast %224 : vector<1x2x16xf32> to vector<2x16xf32>
    %226 = vector.shape_cast %223 : vector<2x16xf32> to vector<1x2x16xf32>
    tpu.vector_store %arg6[%c3_51, %c0_52, %c16_53], %226 {strides = array<i32>} : memref<8x2x32xf32, #tpu.memory_space<vmem>>, vector<1x2x16xf32>,
    %227 = vector.extract_strided_slice %2 {offsets = [10, 0], sizes = [2, 128], strides = [1, 1]} : vector<16x128xf32> to vector<2x128xf32>
    %228 = vector.extract_strided_slice %2 {offsets = [4, 0], sizes = [2, 128], strides = [1, 1]} : vector<16x128xf32> to vector<2x128xf32>
    %229 = arith.select %23, %227, %228 : vector<2x128xi1>, vector<2x128xf32>
    %cst_54 = arith.constant dense<0.000000e+00> : vector<2x128xf32>
    %230 = tpu.matmul %218, %3, %cst_54 {dimension_numbers = #tpu.dot_dimension_numbers<[1], [0], [0], [1], [0, 0, 1, 1], [], []>} : vector<2x32xf32>, vector<32x128xf32>, vector<2x128xf32> -> vector<2x128xf32>
    %231 = arith.addf %229, %230 : vector<2x128xf32>
    %232 = vector.broadcast %4 : vector<1x128xf32> to vector<2x128xf32>
    %233 = arith.addf %231, %232 : vector<2x128xf32>
    %234 = vector.extract_strided_slice %233 {offsets = [0, 0], sizes = [2, 32], strides = [1, 1]} : vector<2x128xf32> to vector<2x32xf32>
    %235 = arith.negf %234 : vector<2x32xf32>
    %236 = math.exp %235 : vector<2x32xf32>
    %cst_55 = arith.constant 1.000000e+00 : f32
    %237 = vector.broadcast %cst_55 : f32 to vector<2x32xf32>
    %238 = arith.addf %237, %236 : vector<2x32xf32>
    %239 = arith.divf %237, %238 : vector<2x32xf32>
    %240 = vector.extract_strided_slice %233 {offsets = [0, 32], sizes = [2, 32], strides = [1, 1]} : vector<2x128xf32> to vector<2x32xf32>
    %241 = arith.negf %240 : vector<2x32xf32>
    %242 = math.exp %241 : vector<2x32xf32>
    %cst_56 = arith.constant 1.000000e+00 : f32
    %243 = vector.broadcast %cst_56 : f32 to vector<2x32xf32>
    %244 = arith.addf %243, %242 : vector<2x32xf32>
    %245 = arith.divf %243, %244 : vector<2x32xf32>
    %246 = vector.extract_strided_slice %233 {offsets = [0, 64], sizes = [2, 32], strides = [1, 1]} : vector<2x128xf32> to vector<2x32xf32>
    %247 = math.tanh %246 : vector<2x32xf32>
    %248 = vector.extract_strided_slice %233 {offsets = [0, 96], sizes = [2, 32], strides = [1, 1]} : vector<2x128xf32> to vector<2x32xf32>
    %249 = arith.negf %248 : vector<2x32xf32>
    %250 = math.exp %249 : vector<2x32xf32>
    %cst_57 = arith.constant 1.000000e+00 : f32
    %251 = vector.broadcast %cst_57 : f32 to vector<2x32xf32>
    %252 = arith.addf %251, %250 : vector<2x32xf32>
    %253 = arith.divf %251, %252 : vector<2x32xf32>
    %254 = arith.mulf %245, %216 : vector<2x32xf32>
    %255 = arith.mulf %239, %247 : vector<2x32xf32>
    %256 = arith.addf %254, %255 : vector<2x32xf32>
    %257 = math.tanh %256 : vector<2x32xf32>
    %258 = arith.mulf %253, %257 : vector<2x32xf32>
    %259 = vector.extract_strided_slice %258 {offsets = [0, 0], sizes = [2, 16], strides = [1, 1]} : vector<2x32xf32> to vector<2x16xf32>
    %c5_58 = arith.constant 5 : index
    %c0_59 = arith.constant 0 : index
    %c0_60 = arith.constant 0 : index
    %260 = vector.load %arg6[%c5_58, %c0_59, %c0_60] : memref<8x2x32xf32, #tpu.memory_space<vmem>>, vector<1x2x16xf32>
    %261 = vector.shape_cast %260 : vector<1x2x16xf32> to vector<2x16xf32>
    %262 = vector.shape_cast %259 : vector<2x16xf32> to vector<1x2x16xf32>
    tpu.vector_store %arg6[%c5_58, %c0_59, %c0_60], %262 {strides = array<i32>} : memref<8x2x32xf32, #tpu.memory_space<vmem>>, vector<1x2x16xf32>,
    %263 = vector.extract_strided_slice %258 {offsets = [0, 16], sizes = [2, 16], strides = [1, 1]} : vector<2x32xf32> to vector<2x16xf32>
    %c2_61 = arith.constant 2 : index
    %c0_62 = arith.constant 0 : index
    %c16_63 = arith.constant 16 : index
    %264 = vector.load %arg6[%c2_61, %c0_62, %c16_63] : memref<8x2x32xf32, #tpu.memory_space<vmem>>, vector<1x2x16xf32>
    %265 = vector.shape_cast %264 : vector<1x2x16xf32> to vector<2x16xf32>
    %266 = vector.shape_cast %263 : vector<2x16xf32> to vector<1x2x16xf32>
    tpu.vector_store %arg6[%c2_61, %c0_62, %c16_63], %266 {strides = array<i32>} : memref<8x2x32xf32, #tpu.memory_space<vmem>>, vector<1x2x16xf32>,
    %267 = vector.extract_strided_slice %2 {offsets = [12, 0], sizes = [2, 128], strides = [1, 1]} : vector<16x128xf32> to vector<2x128xf32>
    %268 = vector.extract_strided_slice %2 {offsets = [2, 0], sizes = [2, 128], strides = [1, 1]} : vector<16x128xf32> to vector<2x128xf32>
    %269 = arith.select %23, %267, %268 : vector<2x128xi1>, vector<2x128xf32>
    %cst_64 = arith.constant dense<0.000000e+00> : vector<2x128xf32>
    %270 = tpu.matmul %258, %3, %cst_64 {dimension_numbers = #tpu.dot_dimension_numbers<[1], [0], [0], [1], [0, 0, 1, 1], [], []>} : vector<2x32xf32>, vector<32x128xf32>, vector<2x128xf32> -> vector<2x128xf32>
    %271 = arith.addf %269, %270 : vector<2x128xf32>
    %272 = vector.broadcast %4 : vector<1x128xf32> to vector<2x128xf32>
    %273 = arith.addf %271, %272 : vector<2x128xf32>
    %274 = vector.extract_strided_slice %273 {offsets = [0, 0], sizes = [2, 32], strides = [1, 1]} : vector<2x128xf32> to vector<2x32xf32>
    %275 = arith.negf %274 : vector<2x32xf32>
    %276 = math.exp %275 : vector<2x32xf32>
    %cst_65 = arith.constant 1.000000e+00 : f32
    %277 = vector.broadcast %cst_65 : f32 to vector<2x32xf32>
    %278 = arith.addf %277, %276 : vector<2x32xf32>
    %279 = arith.divf %277, %278 : vector<2x32xf32>
    %280 = vector.extract_strided_slice %273 {offsets = [0, 32], sizes = [2, 32], strides = [1, 1]} : vector<2x128xf32> to vector<2x32xf32>
    %281 = arith.negf %280 : vector<2x32xf32>
    %282 = math.exp %281 : vector<2x32xf32>
    %cst_66 = arith.constant 1.000000e+00 : f32
    %283 = vector.broadcast %cst_66 : f32 to vector<2x32xf32>
    %284 = arith.addf %283, %282 : vector<2x32xf32>
    %285 = arith.divf %283, %284 : vector<2x32xf32>
    %286 = vector.extract_strided_slice %273 {offsets = [0, 64], sizes = [2, 32], strides = [1, 1]} : vector<2x128xf32> to vector<2x32xf32>
    %287 = math.tanh %286 : vector<2x32xf32>
    %288 = vector.extract_strided_slice %273 {offsets = [0, 96], sizes = [2, 32], strides = [1, 1]} : vector<2x128xf32> to vector<2x32xf32>
    %289 = arith.negf %288 : vector<2x32xf32>
    %290 = math.exp %289 : vector<2x32xf32>
    %cst_67 = arith.constant 1.000000e+00 : f32
    %291 = vector.broadcast %cst_67 : f32 to vector<2x32xf32>
    %292 = arith.addf %291, %290 : vector<2x32xf32>
    %293 = arith.divf %291, %292 : vector<2x32xf32>
    %294 = arith.mulf %285, %256 : vector<2x32xf32>
    %295 = arith.mulf %279, %287 : vector<2x32xf32>
    %296 = arith.addf %294, %295 : vector<2x32xf32>
    %297 = math.tanh %296 : vector<2x32xf32>
    %298 = arith.mulf %293, %297 : vector<2x32xf32>
    %299 = vector.extract_strided_slice %298 {offsets = [0, 0], sizes = [2, 16], strides = [1, 1]} : vector<2x32xf32> to vector<2x16xf32>
    %c6_68 = arith.constant 6 : index
    %c0_69 = arith.constant 0 : index
    %c0_70 = arith.constant 0 : index
    %300 = vector.load %arg6[%c6_68, %c0_69, %c0_70] : memref<8x2x32xf32, #tpu.memory_space<vmem>>, vector<1x2x16xf32>
    %301 = vector.shape_cast %300 : vector<1x2x16xf32> to vector<2x16xf32>
    %302 = vector.shape_cast %299 : vector<2x16xf32> to vector<1x2x16xf32>
    tpu.vector_store %arg6[%c6_68, %c0_69, %c0_70], %302 {strides = array<i32>} : memref<8x2x32xf32, #tpu.memory_space<vmem>>, vector<1x2x16xf32>,
    %303 = vector.extract_strided_slice %298 {offsets = [0, 16], sizes = [2, 16], strides = [1, 1]} : vector<2x32xf32> to vector<2x16xf32>
    %c1_71 = arith.constant 1 : index
    %c0_72 = arith.constant 0 : index
    %c16_73 = arith.constant 16 : index
    %304 = vector.load %arg6[%c1_71, %c0_72, %c16_73] : memref<8x2x32xf32, #tpu.memory_space<vmem>>, vector<1x2x16xf32>
    %305 = vector.shape_cast %304 : vector<1x2x16xf32> to vector<2x16xf32>
    %306 = vector.shape_cast %303 : vector<2x16xf32> to vector<1x2x16xf32>
    tpu.vector_store %arg6[%c1_71, %c0_72, %c16_73], %306 {strides = array<i32>} : memref<8x2x32xf32, #tpu.memory_space<vmem>>, vector<1x2x16xf32>,
    %307 = vector.extract_strided_slice %2 {offsets = [14, 0], sizes = [2, 128], strides = [1, 1]} : vector<16x128xf32> to vector<2x128xf32>
    %308 = vector.extract_strided_slice %2 {offsets = [0, 0], sizes = [2, 128], strides = [1, 1]} : vector<16x128xf32> to vector<2x128xf32>
    %309 = arith.select %23, %307, %308 : vector<2x128xi1>, vector<2x128xf32>
    %cst_74 = arith.constant dense<0.000000e+00> : vector<2x128xf32>
    %310 = tpu.matmul %298, %3, %cst_74 {dimension_numbers = #tpu.dot_dimension_numbers<[1], [0], [0], [1], [0, 0, 1, 1], [], []>} : vector<2x32xf32>, vector<32x128xf32>, vector<2x128xf32> -> vector<2x128xf32>
    %311 = arith.addf %309, %310 : vector<2x128xf32>
    %312 = vector.broadcast %4 : vector<1x128xf32> to vector<2x128xf32>
    %313 = arith.addf %311, %312 : vector<2x128xf32>
    %314 = vector.extract_strided_slice %313 {offsets = [0, 0], sizes = [2, 32], strides = [1, 1]} : vector<2x128xf32> to vector<2x32xf32>
    %315 = arith.negf %314 : vector<2x32xf32>
    %316 = math.exp %315 : vector<2x32xf32>
    %cst_75 = arith.constant 1.000000e+00 : f32
    %317 = vector.broadcast %cst_75 : f32 to vector<2x32xf32>
    %318 = arith.addf %317, %316 : vector<2x32xf32>
    %319 = arith.divf %317, %318 : vector<2x32xf32>
    %320 = vector.extract_strided_slice %313 {offsets = [0, 32], sizes = [2, 32], strides = [1, 1]} : vector<2x128xf32> to vector<2x32xf32>
    %321 = arith.negf %320 : vector<2x32xf32>
    %322 = math.exp %321 : vector<2x32xf32>
    %cst_76 = arith.constant 1.000000e+00 : f32
    %323 = vector.broadcast %cst_76 : f32 to vector<2x32xf32>
    %324 = arith.addf %323, %322 : vector<2x32xf32>
    %325 = arith.divf %323, %324 : vector<2x32xf32>
    %326 = vector.extract_strided_slice %313 {offsets = [0, 64], sizes = [2, 32], strides = [1, 1]} : vector<2x128xf32> to vector<2x32xf32>
    %327 = math.tanh %326 : vector<2x32xf32>
    %328 = vector.extract_strided_slice %313 {offsets = [0, 96], sizes = [2, 32], strides = [1, 1]} : vector<2x128xf32> to vector<2x32xf32>
    %329 = arith.negf %328 : vector<2x32xf32>
    %330 = math.exp %329 : vector<2x32xf32>
    %cst_77 = arith.constant 1.000000e+00 : f32
    %331 = vector.broadcast %cst_77 : f32 to vector<2x32xf32>
    %332 = arith.addf %331, %330 : vector<2x32xf32>
    %333 = arith.divf %331, %332 : vector<2x32xf32>
    %334 = arith.mulf %325, %296 : vector<2x32xf32>
    %335 = arith.mulf %319, %327 : vector<2x32xf32>
    %336 = arith.addf %334, %335 : vector<2x32xf32>
    %337 = math.tanh %336 : vector<2x32xf32>
    %338 = arith.mulf %333, %337 : vector<2x32xf32>
    %339 = vector.extract_strided_slice %338 {offsets = [0, 0], sizes = [2, 16], strides = [1, 1]} : vector<2x32xf32> to vector<2x16xf32>
    %c7_78 = arith.constant 7 : index
    %c0_79 = arith.constant 0 : index
    %c0_80 = arith.constant 0 : index
    %340 = vector.load %arg6[%c7_78, %c0_79, %c0_80] : memref<8x2x32xf32, #tpu.memory_space<vmem>>, vector<1x2x16xf32>
    %341 = vector.shape_cast %340 : vector<1x2x16xf32> to vector<2x16xf32>
    %342 = vector.shape_cast %339 : vector<2x16xf32> to vector<1x2x16xf32>
    tpu.vector_store %arg6[%c7_78, %c0_79, %c0_80], %342 {strides = array<i32>} : memref<8x2x32xf32, #tpu.memory_space<vmem>>, vector<1x2x16xf32>,
    %343 = vector.extract_strided_slice %338 {offsets = [0, 16], sizes = [2, 16], strides = [1, 1]} : vector<2x32xf32> to vector<2x16xf32>
    %c0_81 = arith.constant 0 : index
    %c0_82 = arith.constant 0 : index
    %c16_83 = arith.constant 16 : index
    %344 = vector.load %arg6[%c0_81, %c0_82, %c16_83] : memref<8x2x32xf32, #tpu.memory_space<vmem>>, vector<1x2x16xf32>
    %345 = vector.shape_cast %344 : vector<1x2x16xf32> to vector<2x16xf32>
    %346 = vector.shape_cast %343 : vector<2x16xf32> to vector<1x2x16xf32>
    tpu.vector_store %arg6[%c0_81, %c0_82, %c16_83], %346 {strides = array<i32>} : memref<8x2x32xf32, #tpu.memory_space<vmem>>, vector<1x2x16xf32>,
    %347 = vector.extract_strided_slice %338 {offsets = [0, 0], sizes = [2, 16], strides = [1, 1]} : vector<2x32xf32> to vector<2x16xf32>
    %348 = tpu.concatenate %347, %66 in 1 : vector<2x16xf32>, vector<2x16xf32> -> vector<2x32xf32>
    %c0_84 = arith.constant 0 : index
    %c0_85 = arith.constant 0 : index
    %349 = vector.load %arg4[%c0_84, %c0_85] : memref<32x32xf32, #tpu.memory_space<vmem>>, vector<32x32xf32>
    %cst_86 = arith.constant dense<0.000000e+00> : vector<2x32xf32>
    %350 = tpu.matmul %348, %349, %cst_86 {dimension_numbers = #tpu.dot_dimension_numbers<[1], [0], [0], [1], [0, 0, 1, 1], [], []>} : vector<2x32xf32>, vector<32x32xf32>, vector<2x32xf32> -> vector<2x32xf32>
    %c0_87 = arith.constant 0 : index
    %c0_88 = arith.constant 0 : index
    %351 = vector.load %arg5[%c0_87, %c0_88] : memref<1x32xf32, #tpu.memory_space<vmem>>, vector<1x32xf32>
    %352 = vector.broadcast %351 : vector<1x32xf32> to vector<2x32xf32>
    %353 = arith.addf %350, %352 : vector<2x32xf32>
    %c0_89 = arith.constant 0 : index
    %c0_90 = arith.constant 0 : index
    %354 = vector.load %arg7[%c0_89, %c0_90] : memref<2x32xf32, #tpu.memory_space<vmem>>, vector<2x32xf32>
    tpu.vector_store %arg7[%c0_89, %c0_90], %353 {strides = array<i32>} : memref<2x32xf32, #tpu.memory_space<vmem>>, vector<2x32xf32>,
    return
  }
}

</mosaic_0001>

<llo_original>
// kernel: lstm_model_forward.1
$region0: #{lstm_model_forward.1}
  #allocation0 [shape = 'u32[]', space=smem, size = 0x4, offset = 0x4, fixed_abs, tag = 'smem constant byte address 0x4 - core index']
  #allocation1 [shape = 'u32[72,128]{1,0:T(1,128)}', space=vmem, size = 0x9000, scoped, tag = 'internal scratch']
  %s0 = inlined_call_operand.vmem [shape: f32[16,4], index: 0, kind: input, shape index: {}]
  %s1 = inlined_call_operand.vmem [shape: f32[4,128], index: 1, kind: input, shape index: {}]
  %s2 = inlined_call_operand.vmem [shape: f32[32,128], index: 2, kind: input, shape index: {}]
  %s3 = inlined_call_operand.vmem [shape: f32[1,128], index: 3, kind: input, shape index: {}]
  %s4 = inlined_call_operand.vmem [shape: f32[32,32], index: 4, kind: input, shape index: {}]
  %s5 = inlined_call_operand.vmem [shape: f32[1,32], index: 5, kind: input, shape index: {}]
  %s6 = inlined_call_operand.vmem [shape: f32[8,2,32], index: 6, kind: output, shape index: {0}]
  %s7 = inlined_call_operand.hbm [shape: f32[2,32], index: 7, kind: output, shape index: {1}]
  %8 = xla_tuple %s6, %s7
  %s9 = sld [smem:[#allocation0]]
  $region42: #{lstm_model_forward.1} parent=0
    _
  %s11 = ssub.s32 1, %s9
  %s12 = scalar_select 0, %s11, %s9
  $region1: #{lstm_model_forward.1} parent=0
    #allocation2 [shape = 'u8[1024]{0}', space=vmem, size = 0x400, scoped, tag = 'output window, operand 1, single buffered']
    #allocation3 [shape = 's32[1]{0}', space=sflag, size = 0x4, scoped, tag = 'scoped memory for lstm_model_forward.1']
    %13 = vsyncpa [#allocation3], 0
    // Predicated region
    $region2: #{lstm_model_forward.1} parent=1 // pred_check
      _
    $region3: #{lstm_model_forward.1} parent=1 // pred_check_branch
      %15 = sbr.rel (0) target = $region5
    $region4: #{lstm_model_forward.1} parent=1 // pred_region
      _
    $region5: #{lstm_model_forward.1} parent=1 // pred_fallthru
      _
    // Predicated region
    $region6: #{lstm_model_forward.1} parent=1 // pred_check
      _
    $region7: #{lstm_model_forward.1} parent=1 // pred_check_branch
      %17 = sbr.rel (0) target = $region9
    $region8: #{lstm_model_forward.1} parent=1 // pred_region
      _
    $region9: #{lstm_model_forward.1} parent=1 // pred_fallthru
      _
    // Predicated region
    $region10: #{lstm_model_forward.1} parent=1 // pred_check
      _
    $region11: #{lstm_model_forward.1} parent=1 // pred_check_branch
      %19 = sbr.rel (0) target = $region13
    $region12: #{lstm_model_forward.1} parent=1 // pred_region
      _
    $region13: #{lstm_model_forward.1} parent=1 // pred_fallthru
      _
    // Predicated region
    $region14: #{lstm_model_forward.1} parent=1 // pred_check
      _
    $region15: #{lstm_model_forward.1} parent=1 // pred_check_branch
      %21 = sbr.rel (0) target = $region17
    $region16: #{lstm_model_forward.1} parent=1 // pred_region
      _
    $region17: #{lstm_model_forward.1} parent=1 // pred_fallthru
      _
    // Predicated region
    $region18: #{lstm_model_forward.1} parent=1 // pred_check
      _
    $region19: #{lstm_model_forward.1} parent=1 // pred_check_branch
      %23 = sbr.rel (0) target = $region21
    $region20: #{lstm_model_forward.1} parent=1 // pred_region
      _
    $region21: #{lstm_model_forward.1} parent=1 // pred_fallthru
      _
    // Predicated region
    $region22: #{lstm_model_forward.1} parent=1 // pred_check
      _
    $region23: #{lstm_model_forward.1} parent=1 // pred_check_branch
      %25 = sbr.rel (0) target = $region25
    $region24: #{lstm_model_forward.1} parent=1 // pred_region
      _
    $region25: #{lstm_model_forward.1} parent=1 // pred_fallthru
      _
    %v26 = vld [vmem:[%s0] sm:$0xff]
    %v27 = vld [vmem:[%s0 + $0x8] sm:$0xff]
    %v28 = vld [vmem:[%s1] sm:$0xf]
    %vm29 = vcmask 31744
    %v31 = vsel %vm29, %v26, 0
    %v34 = vsel %vm29, %v27, 0
    %vm36 = vcmask 1043456
    %v38 = vsel %vm36, %v28, 0
    %40 = vmatpush.msra.mxu0 0.0
    %41 = vmatpush.msra.mxu0 0.0
    %42 = vmatpush.msra.mxu0 0.0
    %43 = vmatpush.msra.mxu0 0.0
    %44 = vmatpush.msra.mxu0 0.0
    %45 = vmatpush.msra.mxu0 0.0
    %46 = vmatpush.msra.mxu0 0.0
    %47 = vmatpush.msra.mxu0 0.0
    %48 = vmatpush.msra.mxu0 0.0
    %49 = vmatpush.msra.mxu0 0.0
    %50 = vmatpush.msra.mxu0 0.0
    %51 = vmatpush.msra.mxu0 0.0
    %52 = vmatpush.msra.mxu0 0.0
    %53 = vmatpush.msra.mxu0 0.0
    %54 = vmatpush.msra.mxu0 0.0
    %55 = vmatpush.msra.mxu0 %v38
    %56 = vmatmul.f32.gmra.mxu0 %v31
    %v57 = vpop.f32.mrf.mxu0
    %v58 = vadd.f32 0.0, %v57
    %59 = vmatmul.f32.gmra.mxu0 %v34
    %v60 = vpop.f32.mrf.mxu0
    %v61 = vadd.f32 0.0, %v60
    %62 = vdwg.mxu0
    %v63 = vld [vmem:[%s2] sm:$0xff]
    %v64 = vld [vmem:[%s2 + $0x8] sm:$0xff]
    %v65 = vld [vmem:[%s2 + $0x10] sm:$0xff]
    %v66 = vld [vmem:[%s2 + $0x18] sm:$0xff]
    %v67 = vld [vmem:[%s3] sm:$0x1]
    %v68 = vlaneseq
    %v69 = vand.u32 %v68, 127
    %vm70 = vcmp.lt.s32.totalorder %v69, 0
    %v71 = vsub.s32 0, %v69
    %v72 = vsel %vm70, %v71, %v69
    %v73 = vshrl.u32 %v72, 5
    %v74 = vand.u32 %v72, 31
    %v75 = vsub.s32 0, %v74
    %v76 = vsel %vm70, %v75, %v74
    %vm77 = vcmp.ne.s32.totalorder %v76, 0
    %vm78 = vcmp.lt.s32.totalorder %v76, 0
    %vm79 = vmand %vm78, %vm77
    %v80 = vadd.s32 %v76, 32
    %v81 = vsel %vm79, %v80, %v76
    %vm82 = vcmp.lt.s32.totalorder %v81, 16
    %v84 = vrot.slane %v61, 6
    %v86 = vsel %vm82, %v58, %v84
    %vm87 = vcmask 261120
    %v89 = vsel %vm87, 0.0, 0
    %91 = vmatpush.msra.mxu0 0.0
    %92 = vmatpush.msra.mxu0 0.0
    %93 = vmatpush.msra.mxu0 0.0
    %94 = vmatpush.msra.mxu0 0.0
    %95 = vmatpush.msra.mxu0 0.0
    %96 = vmatpush.msra.mxu0 0.0
    %97 = vmatpush.msra.mxu0 0.0
    %98 = vmatpush.msra.mxu0 0.0
    %99 = vmatpush.msra.mxu0 0.0
    %100 = vmatpush.msra.mxu0 0.0
    %101 = vmatpush.msra.mxu0 0.0
    %102 = vmatpush.msra.mxu0 0.0
    %103 = vmatpush.msra.mxu0 %v66
    %104 = vmatpush.msra.mxu0 %v65
    %105 = vmatpush.msra.mxu0 %v64
    %106 = vmatpush.msra.mxu0 %v63
    %107 = vmatmul.f32.gmra.mxu0 %v89
    %v108 = vpop.f32.mrf.mxu0
    %v109 = vadd.f32 0.0, %v108
    %110 = vdwg.mxu0
    %v111 = vadd.f32 %v86, %v109
    %v113 = vperm.slane %v67, 0
    %v115 = vadd.f32 %v111, %v113
    %v116 = vxor.u32 %v115, 2147483648
    %v117 = vmul.f32 %v116, 1.442695
    %v118 = vpow.pop %v117
    %v119 = vadd.f32 %v118, 1.0
    %v120 = vrcp.pop %v119
    %v121 = vmul.f32 %v119, %v120
    %v122 = vsub.f32 1.0, %v121
    %v123 = vmul.f32 %v120, %v122
    %v124 = vadd.f32 %v120, %v123
    %vm125 = vweird.f32 %v119
    %vm126 = vweird.f32 %v120
    %vm127 = vmor %vm125, %vm126
    %v128 = vsel %vm127, %v120, %v124
    %v129 = vand.u32 2147483647, %v119
    %vm130 = vcmp.eq.f32.partialorder %v129, 8.507059e+37
    %v131 = vand.u32 %v119, 2147483648
    %v132 = vor.u32 1.1754944e-38, %v131
    %v133 = vsel %vm130, %v132, %v128
    %v134 = vmul.f32 1.0, %v133
    %v135 = vtanh.pop %v115
    %v136 = vmul.f32 %v134, 0.0
    %138 = vrot.lane.b32.xlu0 %v135, 64
    %v139 = vpop.permute.xlu0 %138
    %v141 = vmul.f32 %v134, %v139
    %143 = vrot.lane.b32.xlu0 %v141, 32
    %v144 = vpop.permute.xlu0 %143
    %v146 = vadd.f32 %v136, %v144
    %v147 = vtanh.pop %v146
    %149 = vrot.lane.b32.xlu0 %v147, 64
    %v150 = vpop.permute.xlu0 %149
    %v152 = vmul.f32 %v134, %v150
    %154 = vrot.lane.b32.xlu0 %v152, 32
    %v155 = vpop.permute.xlu0 %154
    %vm157 = vcmask 123904
    %158 = vst.msk [vmem:[%s6] sm:$0x3] %vm157, %v155
    %s159 = scalar_lea.vmem %s6, 14
    %vm160 = vcmask 255104
    %161 = vst.msk [vmem:[%s159] sm:$0x3] %vm160, %v155
    %v162 = vrot.slane %v61, 2
    %v164 = vsel %vm82, %v58, %v162
    %v165 = vsel %vm87, %v155, 0
    %167 = vmatpush.msra.mxu0 0.0
    %168 = vmatpush.msra.mxu0 0.0
    %169 = vmatpush.msra.mxu0 0.0
    %170 = vmatpush.msra.mxu0 0.0
    %171 = vmatpush.msra.mxu0 0.0
    %172 = vmatpush.msra.mxu0 0.0
    %173 = vmatpush.msra.mxu0 0.0
    %174 = vmatpush.msra.mxu0 0.0
    %175 = vmatpush.msra.mxu0 0.0
    %176 = vmatpush.msra.mxu0 0.0
    %177 = vmatpush.msra.mxu0 0.0
    %178 = vmatpush.msra.mxu0 0.0
    %179 = vmatpush.msra.mxu0 %v66
    %180 = vmatpush.msra.mxu0 %v65
    %181 = vmatpush.msra.mxu0 %v64
    %182 = vmatpush.msra.mxu0 %v63
    %183 = vmatmul.f32.gmra.mxu0 %v165
    %v184 = vpop.f32.mrf.mxu0
    %v185 = vadd.f32 0.0, %v184
    %186 = vdwg.mxu0
    %v188 = vrot.slane %v185, 6
    %v190 = vadd.f32 %v164, %v188
    %v191 = vadd.f32 %v190, %v113
    %v192 = vxor.u32 %v191, 2147483648
    %v193 = vmul.f32 %v192, 1.442695
    %v194 = vpow.pop %v193
    %v195 = vadd.f32 %v194, 1.0
    %v196 = vrcp.pop %v195
    %v197 = vmul.f32 %v195, %v196
    %v198 = vsub.f32 1.0, %v197
    %v199 = vmul.f32 %v196, %v198
    %v200 = vadd.f32 %v196, %v199
    %vm201 = vweird.f32 %v195
    %vm202 = vweird.f32 %v196
    %vm203 = vmor %vm201, %vm202
    %v204 = vsel %vm203, %v196, %v200
    %v205 = vand.u32 2147483647, %v195
    %vm206 = vcmp.eq.f32.partialorder %v205, 8.507059e+37
    %v207 = vand.u32 %v195, 2147483648
    %v208 = vor.u32 1.1754944e-38, %v207
    %v209 = vsel %vm206, %v208, %v204
    %v210 = vmul.f32 1.0, %v209
    %v211 = vtanh.pop %v191
    %v213 = vrot.slane %v146, 6
    %v215 = vmul.f32 %v210, %v213
    %217 = vrot.lane.b32.xlu0 %v211, 64
    %v218 = vpop.permute.xlu0 %217
    %v220 = vmul.f32 %v210, %v218
    %222 = vrot.lane.b32.xlu0 %v220, 32
    %v223 = vpop.permute.xlu0 %222
    %v225 = vadd.f32 %v215, %v223
    %v226 = vtanh.pop %v225
    %228 = vrot.lane.b32.xlu0 %v226, 64
    %v229 = vpop.permute.xlu0 %228
    %v231 = vmul.f32 %v210, %v229
    %233 = vrot.lane.b32.xlu0 %v231, 32
    %v234 = vpop.permute.xlu0 %233
    %s236 = scalar_lea.vmem %s6, 2
    %vm237 = vcmask 125954
    %238 = vst.msk [vmem:[%s236 - $0x2] sm:$0xc] %vm237, %v234
    %s239 = scalar_lea.vmem %s6, 12
    %vm240 = vcmask 257154
    %241 = vst.msk [vmem:[%s239 - $0x2] sm:$0xc] %vm240, %v234
    %v242 = vrot.slane %v231, 2
    %243 = vrot.lane.b32.xlu0 %v242, 32
    %v244 = vpop.permute.xlu0 %243
    %v245 = vsel %vm87, %v244, 0
    %247 = vmatpush.msra.mxu0 0.0
    %248 = vmatpush.msra.mxu0 0.0
    %249 = vmatpush.msra.mxu0 0.0
    %250 = vmatpush.msra.mxu0 0.0
    %251 = vmatpush.msra.mxu0 0.0
    %252 = vmatpush.msra.mxu0 0.0
    %253 = vmatpush.msra.mxu0 0.0
    %254 = vmatpush.msra.mxu0 0.0
    %255 = vmatpush.msra.mxu0 0.0
    %256 = vmatpush.msra.mxu0 0.0
    %257 = vmatpush.msra.mxu0 0.0
    %258 = vmatpush.msra.mxu0 0.0
    %259 = vmatpush.msra.mxu0 %v66
    %260 = vmatpush.msra.mxu0 %v65
    %261 = vmatpush.msra.mxu0 %v64
    %262 = vmatpush.msra.mxu0 %v63
    %263 = vmatmul.f32.gmra.mxu0 %v245
    %v264 = vpop.f32.mrf.mxu0
    %v265 = vadd.f32 0.0, %v264
    %266 = vdwg.mxu0
    %v268 = vrot.slane %v265, 4
    %v270 = vadd.f32 %v86, %v268
    %v271 = vadd.f32 %v270, %v113
    %v272 = vxor.u32 %v271, 2147483648
    %v273 = vmul.f32 %v272, 1.442695
    %v274 = vpow.pop %v273
    %v275 = vadd.f32 %v274, 1.0
    %v276 = vrcp.pop %v275
    %v277 = vmul.f32 %v275, %v276
    %v278 = vsub.f32 1.0, %v277
    %v279 = vmul.f32 %v276, %v278
    %v280 = vadd.f32 %v276, %v279
    %vm281 = vweird.f32 %v275
    %vm282 = vweird.f32 %v276
    %vm283 = vmor %vm281, %vm282
    %v284 = vsel %vm283, %v276, %v280
    %v285 = vand.u32 2147483647, %v275
    %vm286 = vcmp.eq.f32.partialorder %v285, 8.507059e+37
    %v287 = vand.u32 %v275, 2147483648
    %v288 = vor.u32 1.1754944e-38, %v287
    %v289 = vsel %vm286, %v288, %v284
    %v290 = vmul.f32 1.0, %v289
    %v291 = vtanh.pop %v271
    %v293 = vrot.slane %v225, 6
    %v295 = vmul.f32 %v290, %v293
    %297 = vrot.lane.b32.xlu0 %v291, 64
    %v298 = vpop.permute.xlu0 %297
    %v300 = vmul.f32 %v290, %v298
    %302 = vrot.lane.b32.xlu0 %v300, 32
    %v303 = vpop.permute.xlu0 %302
    %v305 = vadd.f32 %v295, %v303
    %v306 = vtanh.pop %v305
    %308 = vrot.lane.b32.xlu0 %v306, 64
    %v309 = vpop.permute.xlu0 %308
    %v311 = vmul.f32 %v290, %v309
    %313 = vrot.lane.b32.xlu0 %v311, 32
    %v314 = vpop.permute.xlu0 %313
    %s316 = scalar_lea.vmem %s6, 4
    %vm317 = vcmask 128004
    %318 = vst.msk [vmem:[%s316 - $0x4] sm:$0x30] %vm317, %v314
    %s319 = scalar_lea.vmem %s6, 10
    %vm320 = vcmask 259204
    %321 = vst.msk [vmem:[%s319 - $0x4] sm:$0x30] %vm320, %v314
    %v322 = vrot.slane %v311, 4
    %323 = vrot.lane.b32.xlu0 %v322, 32
    %v324 = vpop.permute.xlu0 %323
    %v325 = vsel %vm87, %v324, 0
    %327 = vmatpush.msra.mxu0 0.0
    %328 = vmatpush.msra.mxu0 0.0
    %329 = vmatpush.msra.mxu0 0.0
    %330 = vmatpush.msra.mxu0 0.0
    %331 = vmatpush.msra.mxu0 0.0
    %332 = vmatpush.msra.mxu0 0.0
    %333 = vmatpush.msra.mxu0 0.0
    %334 = vmatpush.msra.mxu0 0.0
    %335 = vmatpush.msra.mxu0 0.0
    %336 = vmatpush.msra.mxu0 0.0
    %337 = vmatpush.msra.mxu0 0.0
    %338 = vmatpush.msra.mxu0 0.0
    %339 = vmatpush.msra.mxu0 %v66
    %340 = vmatpush.msra.mxu0 %v65
    %341 = vmatpush.msra.mxu0 %v64
    %342 = vmatpush.msra.mxu0 %v63
    %343 = vmatmul.f32.gmra.mxu0 %v325
    %v344 = vpop.f32.mrf.mxu0
    %v345 = vadd.f32 0.0, %v344
    %346 = vdwg.mxu0
    %v348 = vrot.slane %v345, 2
    %v350 = vadd.f32 %v164, %v348
    %v351 = vadd.f32 %v350, %v113
    %v352 = vxor.u32 %v351, 2147483648
    %v353 = vmul.f32 %v352, 1.442695
    %v354 = vpow.pop %v353
    %v355 = vadd.f32 %v354, 1.0
    %v356 = vrcp.pop %v355
    %v357 = vmul.f32 %v355, %v356
    %v358 = vsub.f32 1.0, %v357
    %v359 = vmul.f32 %v356, %v358
    %v360 = vadd.f32 %v356, %v359
    %vm361 = vweird.f32 %v355
    %vm362 = vweird.f32 %v356
    %vm363 = vmor %vm361, %vm362
    %v364 = vsel %vm363, %v356, %v360
    %v365 = vand.u32 2147483647, %v355
    %vm366 = vcmp.eq.f32.partialorder %v365, 8.507059e+37
    %v367 = vand.u32 %v355, 2147483648
    %v368 = vor.u32 1.1754944e-38, %v367
    %v369 = vsel %vm366, %v368, %v364
    %v370 = vmul.f32 1.0, %v369
    %v371 = vtanh.pop %v351
    %v373 = vrot.slane %v305, 6
    %v375 = vmul.f32 %v370, %v373
    %377 = vrot.lane.b32.xlu0 %v371, 64
    %v378 = vpop.permute.xlu0 %377
    %v380 = vmul.f32 %v370, %v378
    %382 = vrot.lane.b32.xlu0 %v380, 32
    %v383 = vpop.permute.xlu0 %382
    %v385 = vadd.f32 %v375, %v383
    %v386 = vtanh.pop %v385
    %388 = vrot.lane.b32.xlu0 %v386, 64
    %v389 = vpop.permute.xlu0 %388
    %v391 = vmul.f32 %v370, %v389
    %393 = vrot.lane.b32.xlu0 %v391, 32
    %v394 = vpop.permute.xlu0 %393
    %s396 = scalar_lea.vmem %s6, 6
    %vm397 = vcmask 130054
    %398 = vst.msk [vmem:[%s396 - $0x6] sm:$0xc0] %vm397, %v394
    %s399 = scalar_lea.vmem %s6, 8
    %vm400 = vcmask 261254
    %401 = vst.msk [vmem:[%s399 - $0x6] sm:$0xc0] %vm400, %v394
    %v403 = vrot.slane %v58, 6
    %v405 = vsel %vm82, %v61, %v403
    %v406 = vrot.slane %v391, 6
    %407 = vrot.lane.b32.xlu0 %v406, 32
    %v408 = vpop.permute.xlu0 %407
    %v409 = vsel %vm87, %v408, 0
    %411 = vmatpush.msra.mxu0 0.0
    %412 = vmatpush.msra.mxu0 0.0
    %413 = vmatpush.msra.mxu0 0.0
    %414 = vmatpush.msra.mxu0 0.0
    %415 = vmatpush.msra.mxu0 0.0
    %416 = vmatpush.msra.mxu0 0.0
    %417 = vmatpush.msra.mxu0 0.0
    %418 = vmatpush.msra.mxu0 0.0
    %419 = vmatpush.msra.mxu0 0.0
    %420 = vmatpush.msra.mxu0 0.0
    %421 = vmatpush.msra.mxu0 0.0
    %422 = vmatpush.msra.mxu0 0.0
    %423 = vmatpush.msra.mxu0 %v66
    %424 = vmatpush.msra.mxu0 %v65
    %425 = vmatpush.msra.mxu0 %v64
    %426 = vmatpush.msra.mxu0 %v63
    %427 = vmatmul.f32.gmra.mxu0 %v409
    %v428 = vpop.f32.mrf.mxu0
    %v429 = vadd.f32 0.0, %v428
    %430 = vdwg.mxu0
    %v431 = vadd.f32 %v405, %v429
    %v432 = vadd.f32 %v431, %v113
    %v433 = vxor.u32 %v432, 2147483648
    %v434 = vmul.f32 %v433, 1.442695
    %v435 = vpow.pop %v434
    %v436 = vadd.f32 %v435, 1.0
    %v437 = vrcp.pop %v436
    %v438 = vmul.f32 %v436, %v437
    %v439 = vsub.f32 1.0, %v438
    %v440 = vmul.f32 %v437, %v439
    %v441 = vadd.f32 %v437, %v440
    %vm442 = vweird.f32 %v436
    %vm443 = vweird.f32 %v437
    %vm444 = vmor %vm442, %vm443
    %v445 = vsel %vm444, %v437, %v441
    %v446 = vand.u32 2147483647, %v436
    %vm447 = vcmp.eq.f32.partialorder %v446, 8.507059e+37
    %v448 = vand.u32 %v436, 2147483648
    %v449 = vor.u32 1.1754944e-38, %v448
    %v450 = vsel %vm447, %v449, %v445
    %v451 = vmul.f32 1.0, %v450
    %v452 = vtanh.pop %v432
    %v454 = vrot.slane %v385, 6
    %v456 = vmul.f32 %v451, %v454
    %458 = vrot.lane.b32.xlu0 %v452, 64
    %v459 = vpop.permute.xlu0 %458
    %v461 = vmul.f32 %v451, %v459
    %463 = vrot.lane.b32.xlu0 %v461, 32
    %v464 = vpop.permute.xlu0 %463
    %v466 = vadd.f32 %v456, %v464
    %v467 = vtanh.pop %v466
    %469 = vrot.lane.b32.xlu0 %v467, 64
    %v470 = vpop.permute.xlu0 %469
    %v472 = vmul.f32 %v451, %v470
    %474 = vrot.lane.b32.xlu0 %v472, 32
    %v475 = vpop.permute.xlu0 %474
    %477 = vst.msk [vmem:[%s399] sm:$0x3] %vm157, %v475
    %478 = vst.msk [vmem:[%s396] sm:$0x3] %vm160, %v475
    %v479 = vrot.slane %v58, 2
    %v481 = vsel %vm82, %v61, %v479
    %v482 = vsel %vm87, %v475, 0
    %484 = vmatpush.msra.mxu0 0.0
    %485 = vmatpush.msra.mxu0 0.0
    %486 = vmatpush.msra.mxu0 0.0
    %487 = vmatpush.msra.mxu0 0.0
    %488 = vmatpush.msra.mxu0 0.0
    %489 = vmatpush.msra.mxu0 0.0
    %490 = vmatpush.msra.mxu0 0.0
    %491 = vmatpush.msra.mxu0 0.0
    %492 = vmatpush.msra.mxu0 0.0
    %493 = vmatpush.msra.mxu0 0.0
    %494 = vmatpush.msra.mxu0 0.0
    %495 = vmatpush.msra.mxu0 0.0
    %496 = vmatpush.msra.mxu0 %v66
    %497 = vmatpush.msra.mxu0 %v65
    %498 = vmatpush.msra.mxu0 %v64
    %499 = vmatpush.msra.mxu0 %v63
    %500 = vmatmul.f32.gmra.mxu0 %v482
    %v501 = vpop.f32.mrf.mxu0
    %v502 = vadd.f32 0.0, %v501
    %503 = vdwg.mxu0
    %v505 = vrot.slane %v502, 6
    %v507 = vadd.f32 %v481, %v505
    %v508 = vadd.f32 %v507, %v113
    %v509 = vxor.u32 %v508, 2147483648
    %v510 = vmul.f32 %v509, 1.442695
    %v511 = vpow.pop %v510
    %v512 = vadd.f32 %v511, 1.0
    %v513 = vrcp.pop %v512
    %v514 = vmul.f32 %v512, %v513
    %v515 = vsub.f32 1.0, %v514
    %v516 = vmul.f32 %v513, %v515
    %v517 = vadd.f32 %v513, %v516
    %vm518 = vweird.f32 %v512
    %vm519 = vweird.f32 %v513
    %vm520 = vmor %vm518, %vm519
    %v521 = vsel %vm520, %v513, %v517
    %v522 = vand.u32 2147483647, %v512
    %vm523 = vcmp.eq.f32.partialorder %v522, 8.507059e+37
    %v524 = vand.u32 %v512, 2147483648
    %v525 = vor.u32 1.1754944e-38, %v524
    %v526 = vsel %vm523, %v525, %v521
    %v527 = vmul.f32 1.0, %v526
    %v528 = vtanh.pop %v508
    %v530 = vrot.slane %v466, 6
    %v532 = vmul.f32 %v527, %v530
    %534 = vrot.lane.b32.xlu0 %v528, 64
    %v535 = vpop.permute.xlu0 %534
    %v537 = vmul.f32 %v527, %v535
    %539 = vrot.lane.b32.xlu0 %v537, 32
    %v540 = vpop.permute.xlu0 %539
    %v542 = vadd.f32 %v532, %v540
    %v543 = vtanh.pop %v542
    %545 = vrot.lane.b32.xlu0 %v543, 64
    %v546 = vpop.permute.xlu0 %545
    %v548 = vmul.f32 %v527, %v546
    %550 = vrot.lane.b32.xlu0 %v548, 32
    %v551 = vpop.permute.xlu0 %550
    %553 = vst.msk [vmem:[%s319 - $0x2] sm:$0xc] %vm237, %v551
    %554 = vst.msk [vmem:[%s316 - $0x2] sm:$0xc] %vm240, %v551
    %v555 = vrot.slane %v548, 2
    %556 = vrot.lane.b32.xlu0 %v555, 32
    %v557 = vpop.permute.xlu0 %556
    %v558 = vsel %vm87, %v557, 0
    %560 = vmatpush.msra.mxu0 0.0
    %561 = vmatpush.msra.mxu0 0.0
    %562 = vmatpush.msra.mxu0 0.0
    %563 = vmatpush.msra.mxu0 0.0
    %564 = vmatpush.msra.mxu0 0.0
    %565 = vmatpush.msra.mxu0 0.0
    %566 = vmatpush.msra.mxu0 0.0
    %567 = vmatpush.msra.mxu0 0.0
    %568 = vmatpush.msra.mxu0 0.0
    %569 = vmatpush.msra.mxu0 0.0
    %570 = vmatpush.msra.mxu0 0.0
    %571 = vmatpush.msra.mxu0 0.0
    %572 = vmatpush.msra.mxu0 %v66
    %573 = vmatpush.msra.mxu0 %v65
    %574 = vmatpush.msra.mxu0 %v64
    %575 = vmatpush.msra.mxu0 %v63
    %576 = vmatmul.f32.gmra.mxu0 %v558
    %v577 = vpop.f32.mrf.mxu0
    %v578 = vadd.f32 0.0, %v577
    %579 = vdwg.mxu0
    %v581 = vrot.slane %v578, 4
    %v583 = vadd.f32 %v405, %v581
    %v584 = vadd.f32 %v583, %v113
    %v585 = vxor.u32 %v584, 2147483648
    %v586 = vmul.f32 %v585, 1.442695
    %v587 = vpow.pop %v586
    %v588 = vadd.f32 %v587, 1.0
    %v589 = vrcp.pop %v588
    %v590 = vmul.f32 %v588, %v589
    %v591 = vsub.f32 1.0, %v590
    %v592 = vmul.f32 %v589, %v591
    %v593 = vadd.f32 %v589, %v592
    %vm594 = vweird.f32 %v588
    %vm595 = vweird.f32 %v589
    %vm596 = vmor %vm594, %vm595
    %v597 = vsel %vm596, %v589, %v593
    %v598 = vand.u32 2147483647, %v588
    %vm599 = vcmp.eq.f32.partialorder %v598, 8.507059e+37
    %v600 = vand.u32 %v588, 2147483648
    %v601 = vor.u32 1.1754944e-38, %v600
    %v602 = vsel %vm599, %v601, %v597
    %v603 = vmul.f32 1.0, %v602
    %v604 = vtanh.pop %v584
    %v606 = vrot.slane %v542, 6
    %v608 = vmul.f32 %v603, %v606
    %610 = vrot.lane.b32.xlu0 %v604, 64
    %v611 = vpop.permute.xlu0 %610
    %v613 = vmul.f32 %v603, %v611
    %615 = vrot.lane.b32.xlu0 %v613, 32
    %v616 = vpop.permute.xlu0 %615
    %v618 = vadd.f32 %v608, %v616
    %v619 = vtanh.pop %v618
    %621 = vrot.lane.b32.xlu0 %v619, 64
    %v622 = vpop.permute.xlu0 %621
    %v624 = vmul.f32 %v603, %v622
    %626 = vrot.lane.b32.xlu0 %v624, 32
    %v627 = vpop.permute.xlu0 %626
    %629 = vst.msk [vmem:[%s239 - $0x4] sm:$0x30] %vm317, %v627
    %630 = vst.msk [vmem:[%s236 - $0x4] sm:$0x30] %vm320, %v627
    %v631 = vrot.slane %v624, 4
    %632 = vrot.lane.b32.xlu0 %v631, 32
    %v633 = vpop.permute.xlu0 %632
    %v634 = vsel %vm87, %v633, 0
    %636 = vmatpush.msra.mxu0 0.0
    %637 = vmatpush.msra.mxu0 0.0
    %638 = vmatpush.msra.mxu0 0.0
    %639 = vmatpush.msra.mxu0 0.0
    %640 = vmatpush.msra.mxu0 0.0
    %641 = vmatpush.msra.mxu0 0.0
    %642 = vmatpush.msra.mxu0 0.0
    %643 = vmatpush.msra.mxu0 0.0
    %644 = vmatpush.msra.mxu0 0.0
    %645 = vmatpush.msra.mxu0 0.0
    %646 = vmatpush.msra.mxu0 0.0
    %647 = vmatpush.msra.mxu0 0.0
    %648 = vmatpush.msra.mxu0 %v66
    %649 = vmatpush.msra.mxu0 %v65
    %650 = vmatpush.msra.mxu0 %v64
    %651 = vmatpush.msra.mxu0 %v63
    %652 = vmatmul.f32.gmra.mxu0 %v634
    %v653 = vpop.f32.mrf.mxu0
    %v654 = vadd.f32 0.0, %v653
    %655 = vdwg.mxu0
    %v657 = vrot.slane %v654, 2
    %v659 = vadd.f32 %v481, %v657
    %v660 = vadd.f32 %v659, %v113
    %v661 = vxor.u32 %v660, 2147483648
    %v662 = vmul.f32 %v661, 1.442695
    %v663 = vpow.pop %v662
    %v664 = vadd.f32 %v663, 1.0
    %v665 = vrcp.pop %v664
    %v666 = vmul.f32 %v664, %v665
    %v667 = vsub.f32 1.0, %v666
    %v668 = vmul.f32 %v665, %v667
    %v669 = vadd.f32 %v665, %v668
    %vm670 = vweird.f32 %v664
    %vm671 = vweird.f32 %v665
    %vm672 = vmor %vm670, %vm671
    %v673 = vsel %vm672, %v665, %v669
    %v674 = vand.u32 2147483647, %v664
    %vm675 = vcmp.eq.f32.partialorder %v674, 8.507059e+37
    %v676 = vand.u32 %v664, 2147483648
    %v677 = vor.u32 1.1754944e-38, %v676
    %v678 = vsel %vm675, %v677, %v673
    %v679 = vmul.f32 1.0, %v678
    %v680 = vtanh.pop %v660
    %v682 = vrot.slane %v618, 6
    %v684 = vmul.f32 %v679, %v682
    %686 = vrot.lane.b32.xlu0 %v680, 64
    %v687 = vpop.permute.xlu0 %686
    %v689 = vmul.f32 %v679, %v687
    %691 = vrot.lane.b32.xlu0 %v689, 32
    %v692 = vpop.permute.xlu0 %691
    %v694 = vadd.f32 %v684, %v692
    %v695 = vtanh.pop %v694
    %697 = vrot.lane.b32.xlu0 %v695, 64
    %v698 = vpop.permute.xlu0 %697
    %v700 = vmul.f32 %v679, %v698
    %702 = vrot.lane.b32.xlu0 %v700, 32
    %v703 = vpop.permute.xlu0 %702
    %705 = vst.msk [vmem:[%s159 - $0x6] sm:$0xc0] %vm397, %v703
    %706 = vst.msk [vmem:[%s6 - $0x6] sm:$0xc0] %vm400, %v703
    %v707 = vrot.slane %v152, 2
    %708 = vrot.lane.b32.xlu0 %v707, 32
    %v709 = vpop.permute.xlu0 %708
    %vm711 = vcmask 130048
    %v712 = vsel %vm711, %v703, %v709
    %v713 = vld [vmem:[%s4] sm:$0xff]
    %v714 = vld [vmem:[%s4 + $0x8] sm:$0xff]
    %v715 = vld [vmem:[%s4 + $0x10] sm:$0xff]
    %v716 = vld [vmem:[%s4 + $0x18] sm:$0xff]
    %v717 = vld [vmem:[%s5] sm:$0x1]
    %v719 = vperm.slane %v717, 0
    %v722 = vrot.slane %v712, 6
    %v723 = vsel %vm87, %v722, 0
    %725 = vmatpush.msra.mxu0 0.0
    %726 = vmatpush.msra.mxu0 0.0
    %727 = vmatpush.msra.mxu0 0.0
    %728 = vmatpush.msra.mxu0 0.0
    %729 = vmatpush.msra.mxu0 0.0
    %730 = vmatpush.msra.mxu0 0.0
    %731 = vmatpush.msra.mxu0 0.0
    %732 = vmatpush.msra.mxu0 0.0
    %733 = vmatpush.msra.mxu0 0.0
    %734 = vmatpush.msra.mxu0 0.0
    %735 = vmatpush.msra.mxu0 0.0
    %736 = vmatpush.msra.mxu0 0.0
    %737 = vmatpush.msra.mxu0 %v716
    %738 = vmatpush.msra.mxu0 %v715
    %739 = vmatpush.msra.mxu0 %v714
    %740 = vmatpush.msra.mxu0 %v713
    %741 = vmatmul.f32.gmra.mxu0 %v723
    %v742 = vpop.f32.mrf.mxu0
    %v743 = vadd.f32 %v719, %v742
    %744 = vdwg.mxu0
    %vm745 = vcmask 254976
    %746 = vst.msk [vmem:[#allocation2] sm:$0x3] %vm745, %v743
    // Predicated region
    $region26: #{lstm_model_forward.1} parent=1 // pred_check
      _
    $region27: #{lstm_model_forward.1} parent=1 // pred_check_branch
      %748 = sbr.rel (0) target = $region29
    $region28: #{lstm_model_forward.1} parent=1 // pred_region
      _
    $region29: #{lstm_model_forward.1} parent=1 // pred_fallthru
      _
    // Predicated region
    $region30: #{lstm_model_forward.1} parent=1 // pred_check
      _
    $region31: #{lstm_model_forward.1} parent=1 // pred_check_branch
      %750 = sbr.rel (0) target = $region33
    $region32: #{lstm_model_forward.1} parent=1 // pred_region
      %752 = vsyncadd [#allocation3], 0
      %s754 = sshll.u32 [#allocation2], 4
      %s755 = int_to_ptr.vmem [resolvable:$true] %s754
      %s756 = sshll.u32 %s7, 4
      %s757 = int_to_ptr.hbm [resolvable:$true] %s756
      %759 = dma.vmem_to_hbm [thread:$0]  %s755, 32, %s757, [#allocation3]
    $region33: #{lstm_model_forward.1} parent=1 // pred_fallthru
      _
    // Predicated region
    $region34: #{lstm_model_forward.1} parent=1 // pred_check
      _
    $region35: #{lstm_model_forward.1} parent=1 // pred_check_branch
      %761 = sbr.rel (0) target = $region37
    $region36: #{lstm_model_forward.1} parent=1 // pred_region
      _
    $region37: #{lstm_model_forward.1} parent=1 // pred_fallthru
      _
    // Predicated region
    $region38: #{lstm_model_forward.1} parent=1 // pred_check
      _
    $region39: #{lstm_model_forward.1} parent=1 // pred_check_branch
      %763 = sbr.rel (0) target = $region41
    $region40: #{lstm_model_forward.1} parent=1 // pred_region
      %765 = dma.done [#allocation3], 32
    $region41: #{lstm_model_forward.1} parent=1 // pred_fallthru
      _
    %766 = vsyncpa [#allocation3], 1

</llo_original>
